<compile_context>
chip_gen: v5e
topology: v5e:2x2
jax: 0.10.0
libtpu: 0.0.40
codegen_flags: <defaults>
</compile_context>

<pallas_src>
import jax
import jax.numpy as jnp
from jax.experimental import pallas as pl
from jax.experimental.pallas import tpu as pltpu


def _round_up(x: int, m: int) -> int:
    return ((x + m - 1) // m) * m


def _vmem_capacity_bytes(default: int = 64 << 20) -> int:
    """Physical VMEM of the attached TPU; conservative 64 MiB (v7x) fallback."""
    try:
        cap = getattr(pltpu.get_tpu_info(), "vmem_capacity_bytes", None)
        if cap:
            return int(cap)
    except Exception:
        pass
    return default


# ----------------------------------------------------------------------------
# Kernels
# ----------------------------------------------------------------------------
def _ffn_kernel_f32_out(x_ref, w1_ref, b1_ref, w2_ref, b2_ref, o_ref):
    """float32 output: accumulate directly into the resident output block."""
    k = pl.program_id(1)

    @pl.when(k == 0)
    def _():
        o_ref[...] = jnp.zeros_like(o_ref)

    x = x_ref[...]
    if jnp.dtype(w1_ref.dtype).itemsize < jnp.dtype(x.dtype).itemsize:
        x = x.astype(w1_ref.dtype)              # bf16 x bf16 first MXU pass
    h = jnp.dot(x, w1_ref[...], preferred_element_type=jnp.float32)
    h = jnp.maximum(h + b1_ref[...], 0.0)       # bias + ReLU in f32 (v5e-safe)
    # Dropout: identity (inference).
    o_ref[...] += jnp.dot(h.astype(w2_ref.dtype), w2_ref[...],
                          preferred_element_type=jnp.float32)

    @pl.when(k == pl.num_programs(1) - 1)
    def _():
        o_ref[...] += b2_ref[...]               # b2 added exactly once


def _ffn_kernel_acc(x_ref, w1_ref, b1_ref, w2_ref, b2_ref, o_ref, acc_ref):
    """Narrow output dtype: f32 scratch accumulator, cast once in the epilogue."""
    k = pl.program_id(1)

    @pl.when(k == 0)
    def _():
        acc_ref[...] = jnp.zeros_like(acc_ref)

    x = x_ref[...]
    if jnp.dtype(w1_ref.dtype).itemsize < jnp.dtype(x.dtype).itemsize:
        x = x.astype(w1_ref.dtype)
    h = jnp.dot(x, w1_ref[...], preferred_element_type=jnp.float32)
    h = jnp.maximum(h + b1_ref[...], 0.0)
    # Dropout: identity (inference).
    acc_ref[...] += jnp.dot(h.astype(w2_ref.dtype), w2_ref[...],
                            preferred_element_type=jnp.float32)

    @pl.when(k == pl.num_programs(1) - 1)
    def _():
        o_ref[...] = (acc_ref[...] + b2_ref[...]).astype(o_ref.dtype)


# ----------------------------------------------------------------------------
# Weight preparation (call once, cache outside the hot path)
# ----------------------------------------------------------------------------
def prepare_ffn_weights(w1, b1, w2, b2, *, weight_dtype=jnp.bfloat16):
    """Pad d_ff to a multiple of 128 and cast W1/W2 to `weight_dtype`.

    Call ONCE and cache the result: doing this per forward pass would
    re-materialize both weight matrices in HBM on every call.  Zero padding of
    the hidden dim is numerically exact (relu(0)=0, padded W2 rows are zero).
    Biases stay float32 (they are added to the f32 accumulator).
    """
    d_model, d_ff = w1.shape
    dff_pad = _round_up(d_ff, 128)
    if dff_pad != d_ff:
        w1 = jnp.pad(w1, ((0, 0), (0, dff_pad - d_ff)))
        b1 = jnp.pad(b1, ((0, dff_pad - d_ff),))
        w2 = jnp.pad(w2, ((0, dff_pad - d_ff), (0, 0)))
    return (w1.astype(weight_dtype),
            b1.reshape(1, dff_pad).astype(jnp.float32),
            w2.astype(weight_dtype),
            b2.reshape(1, d_model).astype(jnp.float32))


# ----------------------------------------------------------------------------
# Tile selection (VMEM-capacity aware)
# ----------------------------------------------------------------------------
def _choose_tiles(M, d_model, dff_pad, x_isz, w_isz, out_isz, use_scratch,
                  tm_req, d_ff_tile, vmem_cap):
    budget = int(vmem_cap * 0.80)

    # Row-tile alignment: fill the MXU (256 on v6e/v7x, still a multiple of
    # 128 for v5e); for tiny M fall back to sublane alignment.
    if M >= 256:
        align_m = 256
    elif M >= 128:
        align_m = 128
    else:
        align_m = 8

    if tm_req is None:
        # Arithmetic intensity w.r.t. the weight stream is 2*tm/itemsize, so
        # prefer a larger tm where VMEM allows (v5e/v6e 128 MiB -> 512); on
        # 64 MiB parts (v7x) keep tm=256 and shrink tk instead.
        tm_req = 512 if vmem_cap >= (100 << 20) else 256
    tm = min(_round_up(tm_req, align_m), _round_up(M, align_m))
    tm = max(tm, 8)

    def footprint(tm_, tk_):
        f = 2 * tm_ * d_model * x_isz           # x tile (double buffered)
        f += 2 * d_model * tk_ * w_isz          # W1 slab
        f += 2 * tk_ * 4                        # b1 slab (f32)
        f += 2 * tk_ * d_model * w_isz          # W2 slab
        f += 2 * d_model * 4                    # b2
        f += 2 * tm_ * d_model * out_isz        # output tile
        if use_scratch:
            f += tm_ * d_model * 4              # f32 accumulator scratch
        f += tm_ * tk_ * (4 + w_isz)            # h intermediate + its cast
        f += 2 << 20                            # compiler scratch margin
        return f

    # Hidden-dim tile candidates: multiples of 128 that divide dff_pad (no
    # wasted DMA / MXU work on padding), largest first so tk == dff_pad
    # (weights fully VMEM-resident, streamed once) whenever it fits.
    cands = [c for c in range(128, dff_pad + 1, 128) if dff_pad % c == 0]
    if d_ff_tile is not None:
        capped = [c for c in cands if c <= d_ff_tile]
        cands = capped if capped else [cands[0]]
    cands.sort(reverse=True)

    while True:
        tk = next((c for c in cands if footprint(tm, c) <= budget), None)
        if tk is not None:
            break
        if tm <= max(align_m, 8):
            tk = cands[-1]          # smallest candidate; best effort
            break
        # Last resort only: shrinking tm halves arithmetic intensity.
        new_align = align_m if (tm // 2) >= align_m else 8
        tm = max(_round_up(tm // 2, new_align), 8)

    return tm, tk, footprint(tm, tk), align_m


# ----------------------------------------------------------------------------
# Wrapper
# ----------------------------------------------------------------------------
def feed_forward_block(x, w1, b1, w2, b2, *, tm=None, d_ff_tile=None,
                       weight_dtype=jnp.bfloat16):
    """x: (..., d_model) -> (..., d_model).  Eval-mode FeedForwardBlock.

    For best performance pass weights already processed by
    `prepare_ffn_weights` (padded d_ff, weight_dtype, 2-D biases); raw weights
    are auto-prepared here, which costs an extra weight copy per call.
    """
    *lead, d_model = x.shape
    M = 1
    for s in lead:
        M *= s

    prepared = (getattr(b1, "ndim", 1) == 2 and getattr(b2, "ndim", 1) == 2
                and w1.dtype == weight_dtype and w2.dtype == weight_dtype
                and w1.shape[1] % 128 == 0)
    if not prepared:
        w1, b1, w2, b2 = prepare_ffn_weights(w1, b1, w2, b2,
                                             weight_dtype=weight_dtype)
    dff_pad = w1.shape[1]

    out_dtype = x.dtype
    use_scratch = out_dtype != jnp.float32       # f32 out -> accumulate in o_ref

    vmem_cap = _vmem_capacity_bytes()
    x_isz = jnp.dtype(x.dtype).itemsize
    w_isz = jnp.dtype(w1.dtype).itemsize
    out_isz = jnp.dtype(out_dtype).itemsize

    tm_eff, tk, fp, align_m = _choose_tiles(
        M, d_model, dff_pad, x_isz, w_isz, out_isz, use_scratch,
        tm, d_ff_tile, vmem_cap)

    nk = dff_pad // tk
    m_pad = _round_up(M, tm_eff)
    # Megacore: give the "parallel" row axis >= 2 tiles when that is free
    # (weights fully resident -> no extra weight streaming from the split).
    if nk == 1 and m_pad // tm_eff == 1 and tm_eff >= 2 * align_m:
        tm_eff = _round_up(tm_eff // 2, align_m)
        m_pad = _round_up(M, tm_eff)

    x2d = x.reshape(M, d_model)
    if m_pad != M:
        x2d = jnp.pad(x2d, ((0, m_pad - M), (0, 0)))

    grid = (m_pad // tm_eff, nk)

    # VMEM limit: >= the computed footprint, capped by the physical capacity.
    vmem_limit = int(min(max(fp + (4 << 20), 32 << 20), int(vmem_cap * 0.95)))
    vmem_limit = max(vmem_limit, int(fp))
    vmem_limit = min(vmem_limit, int(vmem_cap))

    in_specs = [
        pl.BlockSpec((tm_eff, d_model), lambda i, k: (i, 0)),   # x rows
        pl.BlockSpec((d_model, tk),     lambda i, k: (0, k)),   # W1 slab
        pl.BlockSpec((1, tk),           lambda i, k: (0, k)),   # b1 slab
        pl.BlockSpec((tk, d_model),     lambda i, k: (k, 0)),   # W2 slab
        pl.BlockSpec((1, d_model),      lambda i, k: (0, 0)),   # b2
    ]
    out_spec = pl.BlockSpec((tm_eff, d_model), lambda i, k: (i, 0))

    kernel = _ffn_kernel_acc if use_scratch else _ffn_kernel_f32_out
    scratch = ([pltpu.VMEM((tm_eff, d_model), jnp.float32)]
               if use_scratch else [])

    out2d = pl.pallas_call(
        kernel,
        out_shape=jax.ShapeDtypeStruct((m_pad, d_model), out_dtype),
        grid_spec=pltpu.PrefetchScalarGridSpec(
            num_scalar_prefetch=0,
            grid=grid,
            in_specs=in_specs,
            out_specs=out_spec,
            scratch_shapes=scratch,
        ),
        compiler_params=pltpu.CompilerParams(
            dimension_semantics=("parallel", "arbitrary"),
            vmem_limit_bytes=vmem_limit,
        ),
    )(x2d, w1, b1, w2, b2)

    return out2d[:M].reshape(*lead, d_model)


# ----------------------------------------------------------------------------
# Demo / self-test
# ----------------------------------------------------------------------------
if __name__ == "__main__":
    key = jax.random.PRNGKey(0)

    # --- Test 1: small module-consistent shapes, exact f32 weights ----------
    # x: (batch=2, seq=8, d_model=32), d_ff=64, dropout=0.1 (eval -> identity)
    batch, seq, d_model, d_ff = 2, 8, 32, 64
    kx, kw1, kb1, kw2, kb2 = jax.random.split(key, 5)
    x = jax.random.normal(kx, (batch, seq, d_model), dtype=jnp.float32)
    bound1 = 1.0 / (d_model ** 0.5)
    w1 = jax.random.uniform(kw1, (d_model, d_ff), minval=-bound1, maxval=bound1,
                            dtype=jnp.float32)
    b1 = jax.random.uniform(kb1, (d_ff,), minval=-bound1, maxval=bound1,
                            dtype=jnp.float32)
    bound2 = 1.0 / (d_ff ** 0.5)
    w2 = jax.random.uniform(kw2, (d_ff, d_model), minval=-bound2, maxval=bound2,
                            dtype=jnp.float32)
    b2 = jax.random.uniform(kb2, (d_model,), minval=-bound2, maxval=bound2,
                            dtype=jnp.float32)

    out = feed_forward_block(x, w1, b1, w2, b2, weight_dtype=jnp.float32)
    jax.block_until_ready(out)
    ref = jnp.maximum(x @ w1 + b1, 0.0) @ w2 + b2
    assert out.shape == (batch, seq, d_model)
    assert jnp.allclose(out, ref, atol=1e-5, rtol=1e-5)

    # --- Test 2: bf16 weights prepared once, multi-k reduction, padded rows -
    big_b, big_s, big_dm, big_dff = 4, 96, 128, 640   # M=384, dff already %128
    kb = jax.random.split(key, 6)
    xb = jax.random.normal(kb[0], (big_b, big_s, big_dm), dtype=jnp.float32)
    w1b = jax.random.normal(kb[1], (big_dm, big_dff), dtype=jnp.float32) * 0.02
    b1b = jax.random.normal(kb[2], (big_dff,), dtype=jnp.float32) * 0.02
    w2b = jax.random.normal(kb[3], (big_dff, big_dm), dtype=jnp.float32) * 0.02
    b2b = jax.random.normal(kb[4], (big_dm,), dtype=jnp.float32) * 0.02

    # Prepare (pad + bf16 cast) ONCE outside the hot path.
    w1p, b1p, w2p, b2p = prepare_ffn_weights(w1b, b1b, w2b, b2b,
                                             weight_dtype=jnp.bfloat16)

    out2 = feed_forward_block(xb, w1p, b1p, w2p, b2p, d_ff_tile=128)  # nk > 1
    jax.block_until_ready(out2)
    xc = xb.astype(jnp.bfloat16)
    h2 = jnp.maximum(jnp.dot(xc, w1p, preferred_element_type=jnp.float32) + b1p,
                     0.0)
    ref2 = jnp.dot(h2.astype(jnp.bfloat16), w2p,
                   preferred_element_type=jnp.float32) + b2p
    assert jnp.allclose(out2, ref2.reshape(big_b, big_s, big_dm),
                        atol=2e-2, rtol=2e-2)

    # --- Test 3: bf16 activations (scratch-accumulator path, resident wts) --
    x3 = xb.astype(jnp.bfloat16)
    out3 = feed_forward_block(x3, w1p, b1p, w2p, b2p)   # tk = d_ff, single k
    jax.block_until_ready(out3)
    h3 = jnp.maximum(jnp.dot(x3, w1p, preferred_element_type=jnp.float32) + b1p,
                     0.0)
    ref3 = (jnp.dot(h3.astype(jnp.bfloat16), w2p,
                    preferred_element_type=jnp.float32) + b2p)
    assert jnp.allclose(out3.astype(jnp.float32),
                        ref3.reshape(big_b, big_s, big_dm).astype(jnp.float32),
                        atol=2e-2, rtol=5e-2)

    print("KERNEL_OK")
</pallas_src>

<mosaic_0001>
module attributes {stable_mosaic.version = 11 : i64} {
  func.func @_ffn_kernel_f32_out(%arg0: i32, %arg1: i32, %arg2: memref<8x32xf32, #tpu.memory_space<vmem>>, %arg3: memref<32x128xf32, #tpu.memory_space<vmem>>, %arg4: memref<1x128xf32, #tpu.memory_space<vmem>>, %arg5: memref<128x32xf32, #tpu.memory_space<vmem>>, %arg6: memref<1x32xf32, #tpu.memory_space<vmem>>, %arg7: memref<8x32xf32, #tpu.memory_space<vmem>>) attributes {dimension_semantics = [#tpu.dimension_semantics<parallel>, #tpu.dimension_semantics<arbitrary>], iteration_bounds = array<i64: 2, 1>, scalar_prefetch = 0 : i64, scratch_operands = 0 : i64, tpu.core_type = #tpu.core_type<tc>, window_params = [{transform_indices = @transform_0, window_bounds = array<i64: 8, 32>}, {transform_indices = @transform_1, window_bounds = array<i64: 32, 128>}, {transform_indices = @transform_2, window_bounds = array<i64: 1, 128>}, {transform_indices = @transform_3, window_bounds = array<i64: 128, 32>}, {pipeline_mode = #tpu.pipeline_mode<synchronous>, transform_indices = @transform_4, window_bounds = array<i64: 1, 32>}, {transform_indices = @transform_5, window_bounds = array<i64: 8, 32>}]} {
    %c0_i32 = arith.constant 0 : i32
    %0 = arith.cmpi eq, %arg1, %c0_i32 : i32
    %1 = arith.extui %0 : i1 to i32
    %c0_i32_0 = arith.constant 0 : i32
    %2 = arith.cmpi ne, %1, %c0_i32_0 : i32
    scf.if %2 {
      %cst_16 = arith.constant 0.000000e+00 : f32
      %19 = vector.broadcast %cst_16 : f32 to vector<8x32xf32>
      %c0_17 = arith.constant 0 : index
      %c0_18 = arith.constant 0 : index
      %20 = vector.load %arg7[%c0_17, %c0_18] : memref<8x32xf32, #tpu.memory_space<vmem>>, vector<8x32xf32>
      tpu.vector_store %arg7[%c0_17, %c0_18], %19 {strides = array<i32>} : memref<8x32xf32, #tpu.memory_space<vmem>>, vector<8x32xf32>,
    } else {
    }
    %c0 = arith.constant 0 : index
    %c0_1 = arith.constant 0 : index
    %3 = vector.load %arg2[%c0, %c0_1] : memref<8x32xf32, #tpu.memory_space<vmem>>, vector<8x32xf32>
    %c0_2 = arith.constant 0 : index
    %c0_3 = arith.constant 0 : index
    %4 = vector.load %arg3[%c0_2, %c0_3] : memref<32x128xf32, #tpu.memory_space<vmem>>, vector<32x128xf32>
    %cst = arith.constant dense<0.000000e+00> : vector<8x128xf32>
    %5 = tpu.matmul %3, %4, %cst {dimension_numbers = #tpu.dot_dimension_numbers<[1], [0], [0], [1], [0, 0, 1, 1], [], []>} : vector<8x32xf32>, vector<32x128xf32>, vector<8x128xf32> -> vector<8x128xf32>
    %c0_4 = arith.constant 0 : index
    %c0_5 = arith.constant 0 : index
    %6 = vector.load %arg4[%c0_4, %c0_5] : memref<1x128xf32, #tpu.memory_space<vmem>>, vector<1x128xf32>
    %7 = vector.broadcast %6 : vector<1x128xf32> to vector<8x128xf32>
    %8 = arith.addf %5, %7 : vector<8x128xf32>
    %cst_6 = arith.constant 0.000000e+00 : f32
    %9 = vector.broadcast %cst_6 : f32 to vector<8x128xf32>
    %10 = arith.maximumf %8, %9 : vector<8x128xf32>
    %c0_7 = arith.constant 0 : index
    %c0_8 = arith.constant 0 : index
    %11 = vector.load %arg7[%c0_7, %c0_8] : memref<8x32xf32, #tpu.memory_space<vmem>>, vector<8x32xf32>
    %c0_9 = arith.constant 0 : index
    %c0_10 = arith.constant 0 : index
    %12 = vector.load %arg5[%c0_9, %c0_10] : memref<128x32xf32, #tpu.memory_space<vmem>>, vector<128x32xf32>
    %cst_11 = arith.constant dense<0.000000e+00> : vector<8x32xf32>
    %13 = tpu.matmul %10, %12, %cst_11 {dimension_numbers = #tpu.dot_dimension_numbers<[1], [0], [0], [1], [0, 0, 1, 1], [], []>} : vector<8x128xf32>, vector<128x32xf32>, vector<8x32xf32> -> vector<8x32xf32>
    %14 = arith.addf %11, %13 : vector<8x32xf32>
    %c0_12 = arith.constant 0 : index
    %c0_13 = arith.constant 0 : index
    %15 = vector.load %arg7[%c0_12, %c0_13] : memref<8x32xf32, #tpu.memory_space<vmem>>, vector<8x32xf32>
    tpu.vector_store %arg7[%c0_12, %c0_13], %14 {strides = array<i32>} : memref<8x32xf32, #tpu.memory_space<vmem>>, vector<8x32xf32>,
    %c0_i32_14 = arith.constant 0 : i32
    %16 = arith.cmpi eq, %arg1, %c0_i32_14 : i32
    %17 = arith.extui %16 : i1 to i32
    %c0_i32_15 = arith.constant 0 : i32
    %18 = arith.cmpi ne, %17, %c0_i32_15 : i32
    scf.if %18 {
      %c0_16 = arith.constant 0 : index
      %c0_17 = arith.constant 0 : index
      %19 = vector.load %arg7[%c0_16, %c0_17] : memref<8x32xf32, #tpu.memory_space<vmem>>, vector<8x32xf32>
      %c0_18 = arith.constant 0 : index
      %c0_19 = arith.constant 0 : index
      %20 = vector.load %arg6[%c0_18, %c0_19] : memref<1x32xf32, #tpu.memory_space<vmem>>, vector<1x32xf32>
      %21 = vector.broadcast %20 : vector<1x32xf32> to vector<8x32xf32>
      %22 = arith.addf %19, %21 : vector<8x32xf32>
      %c0_20 = arith.constant 0 : index
      %c0_21 = arith.constant 0 : index
      %23 = vector.load %arg7[%c0_20, %c0_21] : memref<8x32xf32, #tpu.memory_space<vmem>>, vector<8x32xf32>
      tpu.vector_store %arg7[%c0_20, %c0_21], %22 {strides = array<i32>} : memref<8x32xf32, #tpu.memory_space<vmem>>, vector<8x32xf32>,
    } else {
    }
    return
  }
  func.func @transform_0(%arg0: i32, %arg1: i32) -> (i32, i32) {
    %c0_i32 = arith.constant 0 : i32
    %c0_i32_0 = arith.constant 0 : i32
    return %arg0, %c0_i32 : i32, i32
  }
  func.func @transform_1(%arg0: i32, %arg1: i32) -> (i32, i32) {
    %c0_i32 = arith.constant 0 : i32
    %c0_i32_0 = arith.constant 0 : i32
    return %c0_i32, %arg1 : i32, i32
  }
  func.func @transform_2(%arg0: i32, %arg1: i32) -> (i32, i32) {
    %c0_i32 = arith.constant 0 : i32
    %c0_i32_0 = arith.constant 0 : i32
    return %c0_i32, %arg1 : i32, i32
  }
  func.func @transform_3(%arg0: i32, %arg1: i32) -> (i32, i32) {
    %c0_i32 = arith.constant 0 : i32
    %c0_i32_0 = arith.constant 0 : i32
    return %arg1, %c0_i32 : i32, i32
  }
  func.func @transform_4(%arg0: i32, %arg1: i32) -> (i32, i32) {
    %c0_i32 = arith.constant 0 : i32
    %c0_i32_0 = arith.constant 0 : i32
    %c0_i32_1 = arith.constant 0 : i32
    return %c0_i32, %c0_i32_0 : i32, i32
  }
  func.func @transform_5(%arg0: i32, %arg1: i32) -> (i32, i32) {
    %c0_i32 = arith.constant 0 : i32
    %c0_i32_0 = arith.constant 0 : i32
    return %arg0, %c0_i32 : i32, i32
  }
}

</mosaic_0001>

<llo_original>
// kernel: tpu_custom_call.1
$region0: #{tpu_custom_call.1}
  #allocation0 [shape = 'u32[]', space=smem, size = 0x4, offset = 0x4, fixed_abs, tag = 'smem constant byte address 0x4 - core index']
  #allocation1 [shape = 'u32[72,128]{1,0:T(1,128)}', space=vmem, size = 0x9000, scoped, tag = 'internal scratch']
  %s0 = inlined_call_operand.vmem [shape: f32[16,32], index: 0, kind: input, shape index: {}]
  %s1 = inlined_call_operand.vmem [shape: f32[32,128], index: 1, kind: input, shape index: {}]
  %s2 = inlined_call_operand.vmem [shape: f32[1,128], index: 2, kind: input, shape index: {}]
  %s3 = inlined_call_operand.vmem [shape: f32[128,32], index: 3, kind: input, shape index: {}]
  %s4 = inlined_call_operand.vmem [shape: f32[1,32], index: 4, kind: input, shape index: {}]
  %s5 = inlined_call_operand.hbm [shape: f32[16,32], index: 5, kind: output, shape index: {}]
  %s6 = sld [smem:[#allocation0]]
  $region61: #{tpu_custom_call.1} parent=0
    _
  %s8 = ssub.s32 1, %s6
  %s9 = scalar_select 0, %s8, %s6
  $region1: #{tpu_custom_call.1} parent=0
    #allocation2 [shape = 'u8[8192]{0}', space=vmem, size = 0x2000, scoped, tag = 'output window, operand 0']
    #allocation3 [shape = 's32[2]{0}', space=sflag, size = 0x8, scoped, tag = 'scoped memory for tpu_custom_call.1']
    %10 = vsyncpa [#allocation3], 0
    %s11 = scalar_lea.sflag [#allocation3], 1
    %12 = vsyncpa %s11, 0
    loop: start=0, step=1, limit=4
    $region2: #{tpu_custom_call.1} parent=1 // loop_pre_header
      _
    $region3: #{tpu_custom_call.1} parent=1 // loop_header
      %s14 = sphi 0, %s18
      %p15 = scmp.ge.s32.totalorder %s14, 4
      %s21 = sphi 0, %s33
      %s22 = sphi 0, %s29
      %s23 = sphi 0, %s21
      %s24 = sphi 0, %s22
      %s25 = sphi 0, %s23
      %s26 = sphi 0, %s24
      %s36 = sphi 0, %s38
      %s39 = sphi 0, %s36
      %s40 = sphi 0, %s39
      %s56 = sphi 0, %s40
      %s62 = sphi 0, %s64
      %s65 = sphi 0, %s62
      %s66 = sphi 0, %s65
      %s82 = sphi 0, %s66
      %s88 = sphi 0, %s90
      %s91 = sphi 0, %s88
      %s92 = sphi 0, %s91
      %s108 = sphi 0, %s92
      %s114 = sphi 0, %s116
      %s117 = sphi 0, %s114
      %s118 = sphi 0, %s117
      %s134 = sphi 0, %s118
      %s138 = sphi 0, %s138
      %s140 = sphi 0, %s138
      %s141 = sphi 0, %s140
      %s155 = sphi 0, %s141
      %s161 = sphi 0, %s163
      %s164 = sphi 0, %s161
      %s165 = sphi 0, %s164
      %s181 = sphi 0, %s165
    $region4: #{tpu_custom_call.1} parent=1 // loop_header_branch
      %17 = sbr.rel (%p15) target = $region8
    $region5: #{tpu_custom_call.1} parent=1 // loop_body
      %s19 = ssub.s32 %s14, 1
      %s20 = ssub.s32 %s14, 2
      %s27 = sadd.s32 1, %s22
      %p28 = scmp.ge.s32.totalorder %s27, 1
      %s29 = scalar_select %p28, 0, %s27
      %s30 = sadd.s32 1, %s21
      %s31 = scalar_select %p28, %s30, %s21
      %p32 = scmp.ge.s32.totalorder %s31, 2
      %s33 = scalar_select %p32, 0, %s31
      %s34 = ssub.s32 %s21, %s33
      %p35 = scmp.eq.s32.totalorder %s34, 0
      %s37 = sadd.s32 %s36, 1
      %s38 = scalar_select %p35, %s36, %s37
      %p41 = pneg %p35
      %p42 = scmp.eq.s32.totalorder %s14, 1
      %p43 = por %p41, %p42
      %p44 = scmp.ne.s32.totalorder %s36, %s39
      %p45 = scmp.eq.s32.totalorder %s14, 0
      %p46 = por %p44, %p45
      %p47 = scmp.ne.s32.totalorder %s36, %s39
      %p48 = scmp.eq.s32.totalorder %s19, 1
      %p49 = por %p47, %p48
      %p50 = scmp.ne.s32.totalorder %s39, %s40
      %p51 = scmp.eq.s32.totalorder %s19, 0
      %p52 = por %p50, %p51
      %p53 = scmp.ne.s32.totalorder %s39, %s40
      %p54 = scmp.eq.s32.totalorder %s20, 1
      %p55 = por %p53, %p54
      %p57 = scmp.ne.s32.totalorder %s40, %s56
      %p58 = scmp.eq.s32.totalorder %s20, 0
      %p59 = por %p57, %p58
      %s60 = ssub.s32 %s22, %s29
      %p61 = scmp.eq.s32.totalorder %s60, 0
      %s63 = sadd.s32 %s62, 1
      %s64 = scalar_select %p61, %s62, %s63
      %p67 = pneg %p61
      %p68 = scmp.eq.s32.totalorder %s14, 1
      %p69 = por %p67, %p68
      %p70 = scmp.ne.s32.totalorder %s62, %s65
      %p71 = scmp.eq.s32.totalorder %s14, 0
      %p72 = por %p70, %p71
      %p73 = scmp.ne.s32.totalorder %s62, %s65
      %p74 = scmp.eq.s32.totalorder %s19, 1
      %p75 = por %p73, %p74
      %p76 = scmp.ne.s32.totalorder %s65, %s66
      %p77 = scmp.eq.s32.totalorder %s19, 0
      %p78 = por %p76, %p77
      %p79 = scmp.ne.s32.totalorder %s65, %s66
      %p80 = scmp.eq.s32.totalorder %s20, 1
      %p81 = por %p79, %p80
      %p83 = scmp.ne.s32.totalorder %s66, %s82
      %p84 = scmp.eq.s32.totalorder %s20, 0
      %p85 = por %p83, %p84
      %s86 = ssub.s32 %s22, %s29
      %p87 = scmp.eq.s32.totalorder %s86, 0
      %s89 = sadd.s32 %s88, 1
      %s90 = scalar_select %p87, %s88, %s89
      %p93 = pneg %p87
      %p94 = scmp.eq.s32.totalorder %s14, 1
      %p95 = por %p93, %p94
      %p96 = scmp.ne.s32.totalorder %s88, %s91
      %p97 = scmp.eq.s32.totalorder %s14, 0
      %p98 = por %p96, %p97
      %p99 = scmp.ne.s32.totalorder %s88, %s91
      %p100 = scmp.eq.s32.totalorder %s19, 1
      %p101 = por %p99, %p100
      %p102 = scmp.ne.s32.totalorder %s91, %s92
      %p103 = scmp.eq.s32.totalorder %s19, 0
      %p104 = por %p102, %p103
      %p105 = scmp.ne.s32.totalorder %s91, %s92
      %p106 = scmp.eq.s32.totalorder %s20, 1
      %p107 = por %p105, %p106
      %p109 = scmp.ne.s32.totalorder %s92, %s108
      %p110 = scmp.eq.s32.totalorder %s20, 0
      %p111 = por %p109, %p110
      %s112 = ssub.s32 %s22, %s29
      %p113 = scmp.eq.s32.totalorder %s112, 0
      %s115 = sadd.s32 %s114, 1
      %s116 = scalar_select %p113, %s114, %s115
      %p119 = pneg %p113
      %p120 = scmp.eq.s32.totalorder %s14, 1
      %p121 = por %p119, %p120
      %p122 = scmp.ne.s32.totalorder %s114, %s117
      %p123 = scmp.eq.s32.totalorder %s14, 0
      %p124 = por %p122, %p123
      %p125 = scmp.ne.s32.totalorder %s114, %s117
      %p126 = scmp.eq.s32.totalorder %s19, 1
      %p127 = por %p125, %p126
      %p128 = scmp.ne.s32.totalorder %s117, %s118
      %p129 = scmp.eq.s32.totalorder %s19, 0
      %p130 = por %p128, %p129
      %p131 = scmp.ne.s32.totalorder %s117, %s118
      %p132 = scmp.eq.s32.totalorder %s20, 1
      %p133 = por %p131, %p132
      %p135 = scmp.ne.s32.totalorder %s118, %s134
      %p136 = scmp.eq.s32.totalorder %s20, 0
      %p137 = por %p135, %p136
      %s139 = sadd.s32 %s138, 1
      %p142 = scmp.eq.s32.totalorder %s14, 1
      %p143 = scmp.ne.s32.totalorder %s138, %s140
      %p144 = scmp.eq.s32.totalorder %s14, 0
      %p145 = por %p143, %p144
      %p146 = scmp.ne.s32.totalorder %s138, %s140
      %p147 = scmp.eq.s32.totalorder %s19, 1
      %p148 = por %p146, %p147
      %p149 = scmp.ne.s32.totalorder %s140, %s141
      %p150 = scmp.eq.s32.totalorder %s19, 0
      %p151 = por %p149, %p150
      %p152 = scmp.ne.s32.totalorder %s140, %s141
      %p153 = scmp.eq.s32.totalorder %s20, 1
      %p154 = por %p152, %p153
      %p156 = scmp.ne.s32.totalorder %s141, %s155
      %p157 = scmp.eq.s32.totalorder %s20, 0
      %p158 = por %p156, %p157
      %s159 = ssub.s32 %s21, %s33
      %p160 = scmp.eq.s32.totalorder %s159, 0
      %s162 = sadd.s32 %s161, 1
      %s163 = scalar_select %p160, %s161, %s162
      %p166 = pneg %p160
      %p167 = scmp.eq.s32.totalorder %s14, 1
      %p168 = por %p166, %p167
      %p169 = scmp.ne.s32.totalorder %s161, %s164
      %p170 = scmp.eq.s32.totalorder %s14, 0
      %p171 = por %p169, %p170
      %p172 = scmp.ne.s32.totalorder %s161, %s164
      %p173 = scmp.eq.s32.totalorder %s19, 1
      %p174 = por %p172, %p173
      %p175 = scmp.ne.s32.totalorder %s164, %s165
      %p176 = scmp.eq.s32.totalorder %s19, 0
      %p177 = por %p175, %p176
      %p178 = scmp.ne.s32.totalorder %s164, %s165
      %p179 = scmp.eq.s32.totalorder %s20, 1
      %p180 = por %p178, %p179
      %p182 = scmp.ne.s32.totalorder %s165, %s181
      %p183 = scmp.eq.s32.totalorder %s20, 0
      %p184 = por %p182, %p183
      %p185 = scmp.le.s32.totalorder 1, %s14
      %p186 = scmp.lt.s32.totalorder %s14, 3
      %p187 = pnand %p185, %p186
      %p188 = pneg %p187
      // Predicated region
      $region9: #{tpu_custom_call.1} parent=5 // pred_check
        _
      $region10: #{tpu_custom_call.1} parent=5 // pred_check_branch
        %190 = sbr.rel (%p187) target = $region12
      $region11: #{tpu_custom_call.1} parent=5 // pred_region
        %s191 = ssub.s32 %s14, 1
        // Predicated region
        $region13: #{tpu_custom_call.1} parent=11 // pred_check
          %p192 = pneg %p78
        $region14: #{tpu_custom_call.1} parent=11 // pred_check_branch
          %194 = sbr.rel (%p192) target = $region16
        $region15: #{tpu_custom_call.1} parent=11 // pred_region
          %p195 = scmp.lt.s32.totalorder %s24, 0
          %s196 = scalar_select %p195, %s24, 0
          %s197 = smul.addr %s196, 8
          %s198 = scalar_lea.vmem %s1, %s197
        $region16: #{tpu_custom_call.1} parent=11 // pred_fallthru
          _
        // Predicated region
        $region17: #{tpu_custom_call.1} parent=11 // pred_check
          %p199 = pneg %p104
        $region18: #{tpu_custom_call.1} parent=11 // pred_check_branch
          %201 = sbr.rel (%p199) target = $region20
        $region19: #{tpu_custom_call.1} parent=11 // pred_region
          %p202 = scmp.lt.s32.totalorder %s24, 0
          %s203 = scalar_select %p202, %s24, 0
          %s204 = scalar_lea.vmem %s2, %s203
        $region20: #{tpu_custom_call.1} parent=11 // pred_fallthru
          _
        // Predicated region
        $region21: #{tpu_custom_call.1} parent=11 // pred_check
          %p205 = pneg %p130
        $region22: #{tpu_custom_call.1} parent=11 // pred_check_branch
          %207 = sbr.rel (%p205) target = $region24
        $region23: #{tpu_custom_call.1} parent=11 // pred_region
          %s208 = smul.u32 16, %s24
          %p209 = scmp.lt.s32.totalorder %s208, 15
          %s210 = scalar_select %p209, %s208, 15
          %s211 = smul.addr %s210, 8
          %s212 = scalar_lea.vmem %s3, %s211
          %s213 = smul.u32 16, %s24
        $region24: #{tpu_custom_call.1} parent=11 // pred_fallthru
          _
        // Predicated region
        $region25: #{tpu_custom_call.1} parent=11 // pred_check
          %p214 = pneg %p151
        $region26: #{tpu_custom_call.1} parent=11 // pred_check_branch
          %216 = sbr.rel (%p214) target = $region28
        $region27: #{tpu_custom_call.1} parent=11 // pred_region
          _
        $region28: #{tpu_custom_call.1} parent=11 // pred_fallthru
          _
      $region12: #{tpu_custom_call.1} parent=5 // pred_fallthru
        _
      %p217 = scmp.lt.s32.totalorder %s14, 2
      // Predicated region
      $region29: #{tpu_custom_call.1} parent=5 // pred_check
        %p218 = pneg %p217
      $region30: #{tpu_custom_call.1} parent=5 // pred_check_branch
        %220 = sbr.rel (%p218) target = $region32
      $region31: #{tpu_custom_call.1} parent=5 // pred_region
        // Predicated region
        $region33: #{tpu_custom_call.1} parent=31 // pred_check
          %p221 = pneg %p46
        $region34: #{tpu_custom_call.1} parent=31 // pred_check_branch
          %223 = sbr.rel (%p221) target = $region36
        $region35: #{tpu_custom_call.1} parent=31 // pred_region
          %p224 = scmp.lt.s32.totalorder %s21, 1
          %s225 = scalar_select %p224, %s21, 1
          %s226 = smul.addr %s225, 8
          %s227 = scalar_lea.vmem %s0, %s226
        $region36: #{tpu_custom_call.1} parent=31 // pred_fallthru
          _
      $region32: #{tpu_custom_call.1} parent=5 // pred_fallthru
        _
      %p228 = scmp.le.s32.totalorder 1, %s14
      %p229 = scmp.lt.s32.totalorder %s14, 3
      %p230 = pnand %p228, %p229
      %p231 = pneg %p230
      // Predicated region
      $region37: #{tpu_custom_call.1} parent=5 // pred_check
        _
      $region38: #{tpu_custom_call.1} parent=5 // pred_check_branch
        %233 = sbr.rel (%p230) target = $region40
      $region39: #{tpu_custom_call.1} parent=5 // pred_region
        %s234 = ssub.s32 %s14, 1
        %p235 = scmp.lt.s32.totalorder %s23, 1
        %s236 = scalar_select %p235, %s23, 1
        %s237 = smul.addr %s236, 8
        %s238 = scalar_lea.vmem %s0, %s237
        %p239 = pneg %p52
        %p240 = pneg %p49
        %p241 = scmp.lt.s32.totalorder %s24, 0
        %s242 = scalar_select %p241, %s24, 0
        %s243 = smul.addr %s242, 8
        %s244 = scalar_lea.vmem %s1, %s243
        %p245 = pneg %p78
        %p246 = pneg %p75
        %p247 = scmp.lt.s32.totalorder %s24, 0
        %s248 = scalar_select %p247, %s24, 0
        %s249 = scalar_lea.vmem %s2, %s248
        %p250 = pneg %p104
        %p251 = pneg %p101
        %s252 = smul.u32 16, %s24
        %p253 = scmp.lt.s32.totalorder %s252, 15
        %s254 = scalar_select %p253, %s252, 15
        %s255 = smul.addr %s254, 8
        %s256 = scalar_lea.vmem %s3, %s255
        %p257 = pneg %p130
        %p258 = pneg %p127
        %p259 = pneg %p151
        %p260 = pneg %p148
        %p261 = pneg %p177
        %p262 = pneg %p174
        %s263 = sand.u32 %s164, 1
        %s264 = scalar_lea.sflag [#allocation3], %s263
        %s265 = sand.u32 %s164, 1
        %s266 = smul.addr %s265, 8
        %s267 = scalar_lea.vmem [#allocation2], %s266
        %p268 = scmp.lt.s32.totalorder %s23, 1
        %s269 = scalar_select %p268, %s23, 1
        %s270 = smul.addr %s269, 8
        %s271 = scalar_lea.vmem %s0, %s270
        %p272 = scmp.lt.s32.totalorder %s24, 0
        %s273 = scalar_select %p272, %s24, 0
        %s274 = smul.addr %s273, 8
        %s275 = scalar_lea.vmem %s1, %s274
        %p276 = scmp.lt.s32.totalorder %s24, 0
        %s277 = scalar_select %p276, %s24, 0
        %s278 = scalar_lea.vmem %s2, %s277
        %s279 = smul.u32 16, %s24
        %p280 = scmp.lt.s32.totalorder %s279, 15
        %s281 = scalar_select %p280, %s279, 15
        %s282 = smul.addr %s281, 8
        %s283 = scalar_lea.vmem %s3, %s282
        %s284 = smul.u32 16, %s24
        %p285 = scmp.eq.s32.totalorder %s24, 0
        // Predicated region
        $region41: #{tpu_custom_call.1} parent=39 // pred_check
          %p286 = pneg %p285
        $region42: #{tpu_custom_call.1} parent=39 // pred_check_branch
          %288 = sbr.rel (%p286) target = $region44
        $region43: #{tpu_custom_call.1} parent=39 // pred_region
          %vm289 = vcmask 261120
          %290 = vst.msk [vmem:[%s267] sm:$0xff] %vm289, 0.0
        $region44: #{tpu_custom_call.1} parent=39 // pred_fallthru
          _
        %v291 = vld [vmem:[%s271] sm:$0xff]
        %v292 = vld [vmem:[%s275] sm:$0xff]
        %v293 = vld [vmem:[%s275 + $0x8] sm:$0xff]
        %v294 = vld [vmem:[%s275 + $0x10] sm:$0xff]
        %v295 = vld [vmem:[%s275 + $0x18] sm:$0xff]
        %v296 = vld [vmem:[%s278] sm:$0x1]
        %v298 = vperm.slane %v296, 0
        %vm300 = vcmask 261120
        %v302 = vsel %vm300, %v291, 0
        %304 = vmatpush.msra.mxu0 0.0
        %305 = vmatpush.msra.mxu0 0.0
        %306 = vmatpush.msra.mxu0 0.0
        %307 = vmatpush.msra.mxu0 0.0
        %308 = vmatpush.msra.mxu0 0.0
        %309 = vmatpush.msra.mxu0 0.0
        %310 = vmatpush.msra.mxu0 0.0
        %311 = vmatpush.msra.mxu0 0.0
        %312 = vmatpush.msra.mxu0 0.0
        %313 = vmatpush.msra.mxu0 0.0
        %314 = vmatpush.msra.mxu0 0.0
        %315 = vmatpush.msra.mxu0 0.0
        %316 = vmatpush.msra.mxu0 %v295
        %317 = vmatpush.msra.mxu0 %v294
        %318 = vmatpush.msra.mxu0 %v293
        %319 = vmatpush.msra.mxu0 %v292
        %320 = vmatmul.f32.gmra.mxu0 %v302
        %v321 = vpop.f32.mrf.mxu0
        %v322 = vadd.f32 %v298, %v321
        %323 = vdwg.mxu0
        %v324 = vmax.f32 %v322, 0.0
        %v325 = vld [vmem:[%s267] sm:$0xff]
        %v326 = vld [vmem:[%s283] sm:$0xff]
        %v327 = vld [vmem:[%s283 + $0x8] sm:$0xff]
        %v328 = vld [vmem:[%s283 + $0x10] sm:$0xff]
        %v329 = vld [vmem:[%s283 + $0x18] sm:$0xff]
        %v330 = vld [vmem:[%s283 + $0x20] sm:$0xff]
        %v331 = vld [vmem:[%s283 + $0x28] sm:$0xff]
        %v332 = vld [vmem:[%s283 + $0x30] sm:$0xff]
        %v333 = vld [vmem:[%s283 + $0x38] sm:$0xff]
        %v334 = vld [vmem:[%s283 + $0x40] sm:$0xff]
        %v335 = vld [vmem:[%s283 + $0x48] sm:$0xff]
        %v336 = vld [vmem:[%s283 + $0x50] sm:$0xff]
        %v337 = vld [vmem:[%s283 + $0x58] sm:$0xff]
        %v338 = vld [vmem:[%s283 + $0x60] sm:$0xff]
        %v339 = vld [vmem:[%s283 + $0x68] sm:$0xff]
        %v340 = vld [vmem:[%s283 + $0x70] sm:$0xff]
        %v341 = vld [vmem:[%s283 + $0x78] sm:$0xff]
        %342 = vmatpush.msra.mxu0 %v341
        %343 = vmatpush.msra.mxu0 %v340
        %344 = vmatpush.msra.mxu0 %v339
        %345 = vmatpush.msra.mxu0 %v338
        %346 = vmatpush.msra.mxu0 %v337
        %347 = vmatpush.msra.mxu0 %v336
        %348 = vmatpush.msra.mxu0 %v335
        %349 = vmatpush.msra.mxu0 %v334
        %350 = vmatpush.msra.mxu0 %v333
        %351 = vmatpush.msra.mxu0 %v332
        %352 = vmatpush.msra.mxu0 %v331
        %353 = vmatpush.msra.mxu0 %v330
        %354 = vmatpush.msra.mxu0 %v329
        %355 = vmatpush.msra.mxu0 %v328
        %356 = vmatpush.msra.mxu0 %v327
        %357 = vmatpush.msra.mxu0 %v326
        %358 = vmatmul.f32.gmra.mxu0 %v324
        %v359 = vpop.f32.mrf.mxu0
        %v360 = vadd.f32 0.0, %v359
        %361 = vdwg.mxu0
        %v362 = vadd.f32 %v325, %v360
        %363 = vst.msk [vmem:[%s267] sm:$0xff] %vm300, %v362
        // Predicated region
        $region45: #{tpu_custom_call.1} parent=39 // pred_check
          %p364 = pneg %p285
        $region46: #{tpu_custom_call.1} parent=39 // pred_check_branch
          %366 = sbr.rel (%p364) target = $region48
        $region47: #{tpu_custom_call.1} parent=39 // pred_region
          %v367 = vld [vmem:[%s267] sm:$0xff]
          %v368 = vld [vmem:[%s4] sm:$0x1]
          %v370 = vperm.slane %v368, 0
          %v372 = vadd.f32 %v367, %v370
          %373 = vst.msk [vmem:[%s267] sm:$0xff] %vm300, %v372
        $region48: #{tpu_custom_call.1} parent=39 // pred_fallthru
          _
        %s374 = sand.u32 %s164, 1
        %s375 = scalar_lea.sflag [#allocation3], %s374
        %s376 = sand.u32 %s164, 1
        %s377 = smul.addr %s376, 8
        %s378 = scalar_lea.vmem [#allocation2], %s377
        // Predicated region
        $region49: #{tpu_custom_call.1} parent=39 // pred_check
          %p379 = pneg %p174
        $region50: #{tpu_custom_call.1} parent=39 // pred_check_branch
          %381 = sbr.rel (%p379) target = $region52
        $region51: #{tpu_custom_call.1} parent=39 // pred_region
          %383 = vsyncadd %s375, 0
          %s384 = smul.addr %s23, 8
          %s385 = scalar_lea.hbm %s5, %s384
          %s387 = sshll.u32 %s378, 4
          %s388 = int_to_ptr.vmem [resolvable:$true] %s387
          %s389 = sshll.u32 %s385, 4
          %s390 = int_to_ptr.hbm [resolvable:$true] %s389
          %392 = dma.vmem_to_hbm [thread:$0]  %s388, 128, %s390, %s375
        $region52: #{tpu_custom_call.1} parent=39 // pred_fallthru
          _
      $region40: #{tpu_custom_call.1} parent=5 // pred_fallthru
        _
      %p393 = scmp.le.s32.totalorder 2, %s14
      // Predicated region
      $region53: #{tpu_custom_call.1} parent=5 // pred_check
        %p394 = pneg %p393
      $region54: #{tpu_custom_call.1} parent=5 // pred_check_branch
        %396 = sbr.rel (%p394) target = $region56
      $region55: #{tpu_custom_call.1} parent=5 // pred_region
        %s397 = ssub.s32 %s14, 2
        // Predicated region
        $region57: #{tpu_custom_call.1} parent=55 // pred_check
          %p398 = pneg %p180
        $region58: #{tpu_custom_call.1} parent=55 // pred_check_branch
          %400 = sbr.rel (%p398) target = $region60
        $region59: #{tpu_custom_call.1} parent=55 // pred_region
          %s401 = sand.u32 %s165, 1
          %s402 = scalar_lea.sflag [#allocation3], %s401
          %s403 = sand.u32 %s165, 1
          %s404 = smul.addr %s403, 8
          %s405 = scalar_lea.vmem [#allocation2], %s404
          %407 = dma.done %s402, 128
        $region60: #{tpu_custom_call.1} parent=55 // pred_fallthru
          _
      $region56: #{tpu_custom_call.1} parent=5 // pred_fallthru
        _
    $region6: #{tpu_custom_call.1} parent=1 // loop_footer
      %s18 = sadd.s32 1, %s14
    $region7: #{tpu_custom_call.1} parent=1 // loop_footer_branch
      %13 = sbr.rel target = $region3
    $region8: #{tpu_custom_call.1} parent=1 // loop_exit
      _
    %408 = vsyncpa [#allocation3], 1
    %s409 = scalar_lea.sflag [#allocation3], 1
    %410 = vsyncpa %s409, 1

</llo_original>
